<compile_context>
chip_gen: v6e
topology: v6e:2x2x1
jax: 0.10.0
libtpu: 0.0.40
codegen_flags: <defaults>
</compile_context>

<pallas_src>
from typing import NamedTuple

import jax
import jax.numpy as jnp
from jax.experimental import pallas as pl
from jax.experimental.pallas import tpu as pltpu

BN_EPS = 1e-5
LANE = 128


def _round_up(x, m):
    return ((x + m - 1) // m) * m


def _clamp(v, lo, hi):
    return max(lo, min(hi, int(v)))


# ---------------------------------------------------------------------------
# Parameter preparation (run ONCE at init, not per forward call)
# ---------------------------------------------------------------------------
class ICaRLParams(NamedTuple):
    wfeat: jax.Array   # (K_pad, F_pad) bf16   backbone weight, padded
    gamma: jax.Array   # (1, F_pad)    f32     BN weight, padded with 0
    beta: jax.Array    # (1, F_pad)    f32     BN bias, padded with 0
    wfc: jax.Array     # (F_pad, N_pad) bf16   fc weight, padded
    n_class: int       # original number of classes
    d_in: int          # original flattened input dim


def prepare_icarl_params(w_feat, gamma, beta, w_fc):
    """Pad to lane-dense (multiples of 128) layout and cast weights to bf16.

    Call once at init; pass the result to icarl_forward on every step so no
    weight repacking happens in the per-call path.
    """
    d_in, F = w_feat.shape
    n_class = w_fc.shape[1]
    K_pad = _round_up(d_in, LANE)
    F_pad = _round_up(F, LANE)
    N_pad = _round_up(n_class, LANE)

    wfeat_p = jnp.pad(w_feat, ((0, K_pad - d_in), (0, F_pad - F))).astype(jnp.bfloat16)
    gamma_p = jnp.pad(jnp.asarray(gamma, jnp.float32).reshape(1, F),
                      ((0, 0), (0, F_pad - F)))
    beta_p = jnp.pad(jnp.asarray(beta, jnp.float32).reshape(1, F),
                     ((0, 0), (0, F_pad - F)))
    wfc_p = jnp.pad(w_fc, ((0, F_pad - F), (0, N_pad - n_class))).astype(jnp.bfloat16)
    return ICaRLParams(wfeat=wfeat_p, gamma=gamma_p, beta=beta_p, wfc=wfc_p,
                       n_class=n_class, d_in=d_in)


# ---------------------------------------------------------------------------
# Kernels
# ---------------------------------------------------------------------------
def _bn_relu_fc(feats, gamma, beta, wfc, out_dtype):
    """BN (training-mode batch stats) + ReLU + bias-free fc, all in f32/bf16."""
    mean = jnp.mean(feats, axis=0, keepdims=True)              # (1, F_pad)
    centered = feats - mean
    var = jnp.mean(centered * centered, axis=0, keepdims=True)  # biased var
    inv_std = jax.lax.rsqrt(var + BN_EPS)                       # EUP slot
    bn = centered * inv_std * gamma + beta
    act = jnp.maximum(bn, 0.0)                                  # ReLU (f32 VPU)
    return jnp.dot(act.astype(jnp.bfloat16), wfc,
                   preferred_element_type=jnp.float32).astype(out_dtype)


def _icarl_fused_kernel(x_ref, wfeat_ref, gamma_ref, beta_ref, wfc_ref, o_ref):
    """Whole forward in one invocation (everything resident in VMEM)."""
    feats = jnp.dot(x_ref[...].astype(jnp.bfloat16), wfeat_ref[...],
                    preferred_element_type=jnp.float32)         # (B, F_pad) f32
    o_ref[...] = _bn_relu_fc(feats, gamma_ref[...], beta_ref[...],
                             wfc_ref[...], o_ref.dtype)


def _icarl_tiled_kernel(x_ref, wfeat_ref, gamma_ref, beta_ref, wfc_ref,
                        o_ref, acc_ref):
    """K-tiled backbone matmul with f32 VMEM accumulator + fused epilogue."""
    k = pl.program_id(0)

    @pl.when(k == 0)
    def _():
        acc_ref[...] = jnp.zeros_like(acc_ref)

    acc_ref[...] += jnp.dot(x_ref[...].astype(jnp.bfloat16), wfeat_ref[...],
                            preferred_element_type=jnp.float32)

    @pl.when(k == pl.num_programs(0) - 1)
    def _():
        o_ref[...] = _bn_relu_fc(acc_ref[...], gamma_ref[...], beta_ref[...],
                                 wfc_ref[...], o_ref.dtype)


# ---------------------------------------------------------------------------
# Wrapper
# ---------------------------------------------------------------------------
def _pick_tk(K_pad, F_pad, B, target_step_bytes, tile_vmem_budget):
    """Largest multiple-of-128 divisor of K_pad that stays under the
    double-buffered VMEM tile budget and near the per-step byte target.
    Divisor constraint => zero wasted (all-zero) K columns are ever DMAed."""
    per_k_bytes = F_pad * 2 + B * 4          # bf16 w_feat row + f32 x column
    m = K_pad // LANE
    cap_vmem = max(1, tile_vmem_budget // (2 * per_k_bytes * LANE))
    cap_target = max(1, target_step_bytes // (per_k_bytes * LANE))
    cap = max(1, min(m, cap_vmem, cap_target))
    tb = max(d for d in range(1, cap + 1) if m % d == 0)
    return tb * LANE


def icarl_forward(x_nchw, params: ICaRLParams, *,
                  fused_vmem_budget=20 << 20,
                  target_step_bytes=4 << 20,
                  tile_vmem_budget=24 << 20):
    """x_nchw: (B, C, H, W) f32. Returns (B, n_class) f32."""
    B = x_nchw.shape[0]
    K_pad, F_pad = params.wfeat.shape
    N_pad = params.wfc.shape[1]

    # ---- per-call x prep: flatten (torch .view) + lane pad only if needed.
    x_flat = x_nchw.reshape(B, -1)
    assert x_flat.shape[1] == params.d_in
    if params.d_in != K_pad:
        x_flat = jnp.pad(x_flat, ((0, 0), (0, K_pad - params.d_in)))
    x_p = x_flat.astype(jnp.float32)   # stays f32; cast to bf16 inside kernel

    bytes_x = B * K_pad * 4
    bytes_wfeat = K_pad * F_pad * 2
    bytes_wfc = F_pad * N_pad * 2
    bytes_small = 2 * F_pad * 4 + B * N_pad * 4 + B * F_pad * 4
    fused_total = bytes_x + bytes_wfeat + bytes_wfc + bytes_small

    cost = pl.CostEstimate(
        flops=2 * B * K_pad * F_pad + 2 * B * F_pad * N_pad,
        transcendentals=F_pad,
        bytes_accessed=bytes_x + bytes_wfeat + bytes_wfc
        + 2 * F_pad * 4 + B * N_pad * 4,
    )

    if fused_total <= fused_vmem_budget:
        # -------- single-invocation fused path (no grid, no scratch) -------
        vmem_limit = _clamp(2 * fused_total + (2 << 20), 8 << 20, 48 << 20)
        out_pad = pl.pallas_call(
            _icarl_fused_kernel,
            out_shape=jax.ShapeDtypeStruct((B, N_pad), jnp.float32),
            compiler_params=pltpu.CompilerParams(vmem_limit_bytes=vmem_limit),
            cost_estimate=cost,
        )(x_p, params.wfeat, params.gamma, params.beta, params.wfc)
    else:
        # -------- K-tiled path for large backbones --------------------------
        tk = _pick_tk(K_pad, F_pad, B, target_step_bytes, tile_vmem_budget)
        nk = K_pad // tk
        tile_bytes = 2 * (B * tk * 4 + tk * F_pad * 2)     # double-buffered
        resident_bytes = bytes_wfc + 2 * F_pad * 4 + B * F_pad * 4 \
            + 2 * B * N_pad * 4
        vmem_limit = _clamp(tile_bytes + resident_bytes + (4 << 20),
                            8 << 20, 48 << 20)

        grid_spec = pltpu.PrefetchScalarGridSpec(
            num_scalar_prefetch=0,
            grid=(nk,),  # reduction over the backbone contraction dim
            in_specs=[
                pl.BlockSpec((B, tk), lambda k: (0, k)),         # x tile (f32)
                pl.BlockSpec((tk, F_pad), lambda k: (k, 0)),     # w_feat tile
                # grid-invariant residents: single-buffered
                pl.BlockSpec((1, F_pad), lambda k: (0, 0),
                             pipeline_mode=pl.Buffered(1)),      # gamma
                pl.BlockSpec((1, F_pad), lambda k: (0, 0),
                             pipeline_mode=pl.Buffered(1)),      # beta
                pl.BlockSpec((F_pad, N_pad), lambda k: (0, 0),
                             pipeline_mode=pl.Buffered(1)),      # w_fc
            ],
            out_specs=pl.BlockSpec((B, N_pad), lambda k: (0, 0)),
            scratch_shapes=[pltpu.VMEM((B, F_pad), jnp.float32)],  # f32 acc
        )
        out_pad = pl.pallas_call(
            _icarl_tiled_kernel,
            out_shape=jax.ShapeDtypeStruct((B, N_pad), jnp.float32),
            grid_spec=grid_spec,
            compiler_params=pltpu.CompilerParams(
                dimension_semantics=("arbitrary",),   # K is a reduction axis
                vmem_limit_bytes=vmem_limit,
            ),
            cost_estimate=cost,
        )(x_p, params.wfeat, params.gamma, params.beta, params.wfc)

    return out_pad[:, :params.n_class]


# ---------------------------------------------------------------------------
# Pure-JAX reference (emulates the kernel's bf16-input / f32-acc matmuls)
# ---------------------------------------------------------------------------
def reference_forward(x_nchw, w_feat, gamma, beta, w_fc):
    B = x_nchw.shape[0]
    xb = x_nchw.reshape(B, -1).astype(jnp.bfloat16).astype(jnp.float32)
    wb = w_feat.astype(jnp.bfloat16).astype(jnp.float32)
    feats = xb @ wb
    mean = feats.mean(axis=0, keepdims=True)
    var = ((feats - mean) ** 2).mean(axis=0, keepdims=True)
    bn = (feats - mean) * jax.lax.rsqrt(var + BN_EPS) * gamma.reshape(1, -1) \
        + beta.reshape(1, -1)
    act = jnp.maximum(bn, 0.0)
    return act.astype(jnp.bfloat16).astype(jnp.float32) @ \
        w_fc.astype(jnp.bfloat16).astype(jnp.float32)


# TODO(synk): BatchNorm1d running_mean/running_var updates (momentum=0.01) are
# not emitted; only the training-mode forward normalization is computed.

if __name__ == "__main__":
    key = jax.random.PRNGKey(0)
    k_x, k_wf, k_fc, k_x2, k_wf2, k_fc2 = jax.random.split(key, 6)

    # -------- Test 1: demo shapes -> fused single-invocation path ----------
    B, C, H, W = 8, 4, 16, 16           # input images (NCHW)
    feature_size = 32                    # BatchNorm1d / Linear in-features
    n_class = 10                         # Linear out-features
    d_in = C * H * W

    x = jax.random.normal(k_x, (B, C, H, W), jnp.float32)
    w_feat = jax.random.normal(k_wf, (d_in, feature_size), jnp.float32) \
        * (1.0 / jnp.sqrt(d_in))
    gamma = jnp.ones((feature_size,), jnp.float32)   # BN weight (default 1)
    beta = jnp.zeros((feature_size,), jnp.float32)   # BN bias   (default 0)
    w_fc = jax.random.normal(k_fc, (feature_size, n_class), jnp.float32) \
        * (1.0 / jnp.sqrt(feature_size))

    params = prepare_icarl_params(w_feat, gamma, beta, w_fc)  # hoisted, once
    out = jax.block_until_ready(icarl_forward(x, params))
    ref = reference_forward(x, w_feat, gamma, beta, w_fc)
    assert out.shape == (B, n_class)
    assert jnp.allclose(out, ref, atol=1e-2, rtol=1e-2), (
        float(jnp.max(jnp.abs(out - ref))))

    # -------- Test 2: larger d_in, force the K-tiled multi-step path -------
    C2 = 8
    d_in2 = C2 * H * W                   # 2048 -> tk=256, 8 grid steps
    x2 = jax.random.normal(k_x2, (B, C2, H, W), jnp.float32)
    w_feat2 = jax.random.normal(k_wf2, (d_in2, feature_size), jnp.float32) \
        * (1.0 / jnp.sqrt(d_in2))
    w_fc2 = jax.random.normal(k_fc2, (feature_size, n_class), jnp.float32) \
        * (1.0 / jnp.sqrt(feature_size))
    params2 = prepare_icarl_params(w_feat2, gamma, beta, w_fc2)
    out2 = jax.block_until_ready(
        icarl_forward(x2, params2, fused_vmem_budget=0,
                      target_step_bytes=128 * 1024))
    ref2 = reference_forward(x2, w_feat2, gamma, beta, w_fc2)
    assert out2.shape == (B, n_class)
    assert jnp.allclose(out2, ref2, atol=1e-2, rtol=1e-2), (
        float(jnp.max(jnp.abs(out2 - ref2))))

    print("KERNEL_OK")
</pallas_src>

<mosaic_0001>
module attributes {stable_mosaic.version = 11 : i64} {
  func.func @_icarl_fused_kernel(%arg0: memref<8x1024xf32, #tpu.memory_space<vmem>>, %arg1: memref<1024x128xbf16, #tpu.memory_space<vmem>>, %arg2: memref<1x128xf32, #tpu.memory_space<vmem>>, %arg3: memref<1x128xf32, #tpu.memory_space<vmem>>, %arg4: memref<128x128xbf16, #tpu.memory_space<vmem>>, %arg5: memref<8x128xf32, #tpu.memory_space<vmem>>) attributes {dimension_semantics = [], scalar_prefetch = 0 : i64, scratch_operands = 0 : i64, tpu.core_type = #tpu.core_type<tc>} {
    %c0 = arith.constant 0 : index
    %c0_0 = arith.constant 0 : index
    %0 = vector.load %arg0[%c0, %c0_0] : memref<8x1024xf32, #tpu.memory_space<vmem>>, vector<8x1024xf32>
    %1 = arith.truncf %0 : vector<8x1024xf32> to vector<8x1024xbf16>
    %c0_1 = arith.constant 0 : index
    %c0_2 = arith.constant 0 : index
    %2 = vector.load %arg1[%c0_1, %c0_2] : memref<1024x128xbf16, #tpu.memory_space<vmem>>, vector<1024x128xbf16>
    %cst = arith.constant dense<0.000000e+00> : vector<8x128xf32>
    %3 = tpu.matmul %1, %2, %cst {dimension_numbers = #tpu.dot_dimension_numbers<[1], [0], [0], [1], [0, 0, 1, 1], [], []>} : vector<8x1024xbf16>, vector<1024x128xbf16>, vector<8x128xf32> -> vector<8x128xf32>
    %c0_3 = arith.constant 0 : index
    %c0_4 = arith.constant 0 : index
    %4 = vector.load %arg2[%c0_3, %c0_4] : memref<1x128xf32, #tpu.memory_space<vmem>>, vector<1x128xf32>
    %c0_5 = arith.constant 0 : index
    %c0_6 = arith.constant 0 : index
    %5 = vector.load %arg3[%c0_5, %c0_6] : memref<1x128xf32, #tpu.memory_space<vmem>>, vector<1x128xf32>
    %c0_7 = arith.constant 0 : index
    %c0_8 = arith.constant 0 : index
    %6 = vector.load %arg4[%c0_7, %c0_8] : memref<128x128xbf16, #tpu.memory_space<vmem>>, vector<128x128xbf16>
    %cst_9 = arith.constant dense<0.000000e+00> : vector<128xf32>
    %7 = vector.multi_reduction <add>, %3, %cst_9 [0] : vector<8x128xf32> to vector<128xf32>
    %8 = vector.shape_cast %7 : vector<128xf32> to vector<1x128xf32>
    %cst_10 = arith.constant 8.000000e+00 : f32
    %9 = vector.broadcast %cst_10 : f32 to vector<1x128xf32>
    %10 = arith.divf %8, %9 : vector<1x128xf32>
    %11 = vector.broadcast %10 : vector<1x128xf32> to vector<8x128xf32>
    %12 = arith.subf %3, %11 : vector<8x128xf32>
    %13 = arith.mulf %12, %12 : vector<8x128xf32>
    %cst_11 = arith.constant dense<0.000000e+00> : vector<128xf32>
    %14 = vector.multi_reduction <add>, %13, %cst_11 [0] : vector<8x128xf32> to vector<128xf32>
    %15 = vector.shape_cast %14 : vector<128xf32> to vector<1x128xf32>
    %cst_12 = arith.constant 8.000000e+00 : f32
    %16 = vector.broadcast %cst_12 : f32 to vector<1x128xf32>
    %17 = arith.divf %15, %16 : vector<1x128xf32>
    %cst_13 = arith.constant 9.99999974E-6 : f32
    %18 = vector.broadcast %cst_13 : f32 to vector<1x128xf32>
    %19 = arith.addf %17, %18 : vector<1x128xf32>
    %20 = math.rsqrt %19 : vector<1x128xf32>
    %21 = vector.broadcast %20 : vector<1x128xf32> to vector<8x128xf32>
    %22 = arith.mulf %12, %21 : vector<8x128xf32>
    %23 = vector.broadcast %4 : vector<1x128xf32> to vector<8x128xf32>
    %24 = arith.mulf %22, %23 : vector<8x128xf32>
    %25 = vector.broadcast %5 : vector<1x128xf32> to vector<8x128xf32>
    %26 = arith.addf %24, %25 : vector<8x128xf32>
    %cst_14 = arith.constant 0.000000e+00 : f32
    %27 = vector.broadcast %cst_14 : f32 to vector<8x128xf32>
    %28 = arith.maximumf %26, %27 : vector<8x128xf32>
    %29 = arith.truncf %28 : vector<8x128xf32> to vector<8x128xbf16>
    %cst_15 = arith.constant dense<0.000000e+00> : vector<8x128xf32>
    %30 = tpu.matmul %29, %6, %cst_15 {dimension_numbers = #tpu.dot_dimension_numbers<[1], [0], [0], [1], [0, 0, 1, 1], [], []>} : vector<8x128xbf16>, vector<128x128xbf16>, vector<8x128xf32> -> vector<8x128xf32>
    %c0_16 = arith.constant 0 : index
    %c0_17 = arith.constant 0 : index
    %31 = vector.load %arg5[%c0_16, %c0_17] : memref<8x128xf32, #tpu.memory_space<vmem>>, vector<8x128xf32>
    tpu.vector_store %arg5[%c0_16, %c0_17], %30 {strides = array<i32>} : memref<8x128xf32, #tpu.memory_space<vmem>>, vector<8x128xf32>,
    return
  }
}

</mosaic_0001>

<llo_original>
// kernel: tpu_custom_call.1
$region0: #{tpu_custom_call.1}
  #allocation0 [shape = 'u32[]', space=smem, size = 0x4, offset = 0x4, fixed_abs, tag = 'smem constant byte address 0x4 - core index']
  #allocation1 [shape = 'u32[144,128]{1,0:T(1,128)}', space=vmem, size = 0x12000, scoped, tag = 'internal scratch']
  %s0 = inlined_call_operand.hbm [shape: f32[8,1024], index: 0, kind: input, shape index: {}]
  %s1 = inlined_call_operand.hbm [shape: bf16[1024,128], index: 1, kind: input, shape index: {}]
  %s2 = inlined_call_operand.vmem [shape: f32[1,128], index: 2, kind: input, shape index: {}]
  %s3 = inlined_call_operand.vmem [shape: f32[1,128], index: 3, kind: input, shape index: {}]
  %s4 = inlined_call_operand.hbm [shape: bf16[128,128], index: 4, kind: input, shape index: {}]
  %s5 = inlined_call_operand.hbm [shape: f32[8,128], index: 5, kind: output, shape index: {}]
  %s6 = sld [smem:[#allocation0]]
  $region42: #{tpu_custom_call.1} parent=0
    _
  %s8 = ssub.s32 1, %s6
  %s9 = scalar_select 0, %s8, %s6
  $region1: #{tpu_custom_call.1} parent=0
    #allocation2 [shape = 'u8[32768]{0}', space=vmem, size = 0x8000, scoped, tag = 'input window, operand 0, single buffered']
    #allocation3 [shape = 's32[1]{0}', space=sflag, size = 0x4, scoped, tag = 'scoped memory for tpu_custom_call.1']
    #allocation4 [shape = 's32[1]{0}', space=sflag, size = 0x4, scoped, tag = 'scoped memory for tpu_custom_call.1']
    #allocation5 [shape = 'u8[262144]{0}', space=vmem, size = 0x40000, scoped, tag = 'input window, operand 1, single buffered']
    #allocation6 [shape = 's32[1]{0}', space=sflag, size = 0x4, scoped, tag = 'scoped memory for tpu_custom_call.1']
    #allocation7 [shape = 'u8[32768]{0}', space=vmem, size = 0x8000, scoped, tag = 'input window, operand 4, single buffered']
    #allocation8 [shape = 'u8[4096]{0}', space=vmem, size = 0x1000, scoped, tag = 'output window, operand 0, single buffered']
    %10 = vsyncpa [#allocation3], 0
    %11 = vsyncpa [#allocation6], 0
    %12 = vsyncpa [#allocation4], 0
    // Predicated region
    $region2: #{tpu_custom_call.1} parent=1 // pred_check
      _
    $region3: #{tpu_custom_call.1} parent=1 // pred_check_branch
      %14 = sbr.rel (0) target = $region5
    $region4: #{tpu_custom_call.1} parent=1 // pred_region
      %s16 = ssub.s32 1024, 1024
      %17 = vsyncadd [#allocation3], %s16
      %s19 = sshll.u32 [#allocation2], 4
      %s20 = int_to_ptr.vmem [resolvable:$true] %s19
      %22 = dma.hbm_to_vmem [thread:$0]  %s0, 1024, %s20, [#allocation3]
    $region5: #{tpu_custom_call.1} parent=1 // pred_fallthru
      _
    // Predicated region
    $region6: #{tpu_custom_call.1} parent=1 // pred_check
      _
    $region7: #{tpu_custom_call.1} parent=1 // pred_check_branch
      %24 = sbr.rel (0) target = $region9
    $region8: #{tpu_custom_call.1} parent=1 // pred_region
      %s26 = ssub.s32 8192, 8192
      %27 = vsyncadd [#allocation6], %s26
      %s28 = sshll.u32 [#allocation5], 4
      %s29 = int_to_ptr.vmem [resolvable:$true] %s28
      %34 = dma.hbm_to_vmem [thread:$0]  %s1, 8192, %s29, [#allocation6], 64, 64, 4
    $region9: #{tpu_custom_call.1} parent=1 // pred_fallthru
      _
    // Predicated region
    $region10: #{tpu_custom_call.1} parent=1 // pred_check
      _
    $region11: #{tpu_custom_call.1} parent=1 // pred_check_branch
      %36 = sbr.rel (0) target = $region13
    $region12: #{tpu_custom_call.1} parent=1 // pred_region
      _
    $region13: #{tpu_custom_call.1} parent=1 // pred_fallthru
      _
    // Predicated region
    $region14: #{tpu_custom_call.1} parent=1 // pred_check
      _
    $region15: #{tpu_custom_call.1} parent=1 // pred_check_branch
      %38 = sbr.rel (0) target = $region17
    $region16: #{tpu_custom_call.1} parent=1 // pred_region
      _
    $region17: #{tpu_custom_call.1} parent=1 // pred_fallthru
      _
    // Predicated region
    $region18: #{tpu_custom_call.1} parent=1 // pred_check
      _
    $region19: #{tpu_custom_call.1} parent=1 // pred_check_branch
      %40 = sbr.rel (0) target = $region21
    $region20: #{tpu_custom_call.1} parent=1 // pred_region
      %s42 = ssub.s32 1024, 1024
      %43 = vsyncadd [#allocation6], %s42
      %s44 = sshll.u32 [#allocation7], 4
      %s45 = int_to_ptr.vmem [resolvable:$true] %s44
      %50 = dma.hbm_to_vmem [thread:$0]  %s4, 1024, %s45, [#allocation6], 64, 64, 4
    $region21: #{tpu_custom_call.1} parent=1 // pred_fallthru
      _
    // Predicated region
    $region22: #{tpu_custom_call.1} parent=1 // pred_check
      _
    $region23: #{tpu_custom_call.1} parent=1 // pred_check_branch
      %52 = sbr.rel (0) target = $region25
    $region24: #{tpu_custom_call.1} parent=1 // pred_region
      %53 = dma.done [#allocation3], 1024
    $region25: #{tpu_custom_call.1} parent=1 // pred_fallthru
      _
    // Predicated region
    $region26: #{tpu_custom_call.1} parent=1 // pred_check
      _
    $region27: #{tpu_custom_call.1} parent=1 // pred_check_branch
      %55 = sbr.rel (0) target = $region29
    $region28: #{tpu_custom_call.1} parent=1 // pred_region
      %56 = dma.done [#allocation6], 8192
    $region29: #{tpu_custom_call.1} parent=1 // pred_fallthru
      _
    // Predicated region
    $region30: #{tpu_custom_call.1} parent=1 // pred_check
      _
    $region31: #{tpu_custom_call.1} parent=1 // pred_check_branch
      %58 = sbr.rel (0) target = $region33
    $region32: #{tpu_custom_call.1} parent=1 // pred_region
      %59 = dma.done [#allocation6], 1024
    $region33: #{tpu_custom_call.1} parent=1 // pred_fallthru
      _
    %v61 = vld [vmem:[#allocation2] sm:$0xff]
    %v62 = vld [vmem:[#allocation2 + $0x8] sm:$0xff]
    %v63 = vld [vmem:[#allocation2 + $0x10] sm:$0xff]
    %v64 = vld [vmem:[#allocation2 + $0x18] sm:$0xff]
    %v65 = vld [vmem:[#allocation2 + $0x20] sm:$0xff]
    %v66 = vld [vmem:[#allocation2 + $0x28] sm:$0xff]
    %v67 = vld [vmem:[#allocation2 + $0x30] sm:$0xff]
    %v68 = vld [vmem:[#allocation2 + $0x38] sm:$0xff]
    %v69 = vpack.c.bf16 %v61, %v61
    %v70 = vpack.c.bf16 %v62, %v62
    %v71 = vpack.c.bf16 %v63, %v63
    %v72 = vpack.c.bf16 %v64, %v64
    %v73 = vpack.c.bf16 %v65, %v65
    %v74 = vpack.c.bf16 %v66, %v66
    %v75 = vpack.c.bf16 %v67, %v67
    %v76 = vpack.c.bf16 %v68, %v68
    %v77 = vld [vmem:[#allocation5] sm:$0xf]
    %v78 = vld [vmem:[#allocation5 + $0x4] sm:$0xf]
    %v79 = vld [vmem:[#allocation5 + $0x8] sm:$0xf]
    %v80 = vld [vmem:[#allocation5 + $0xc] sm:$0xf]
    %v81 = vld [vmem:[#allocation5 + $0x10] sm:$0xf]
    %v82 = vld [vmem:[#allocation5 + $0x14] sm:$0xf]
    %v83 = vld [vmem:[#allocation5 + $0x18] sm:$0xf]
    %v84 = vld [vmem:[#allocation5 + $0x1c] sm:$0xf]
    %v85 = vld [vmem:[#allocation5 + $0x20] sm:$0xf]
    %v86 = vld [vmem:[#allocation5 + $0x24] sm:$0xf]
    %v87 = vld [vmem:[#allocation5 + $0x28] sm:$0xf]
    %v88 = vld [vmem:[#allocation5 + $0x2c] sm:$0xf]
    %v89 = vld [vmem:[#allocation5 + $0x30] sm:$0xf]
    %v90 = vld [vmem:[#allocation5 + $0x34] sm:$0xf]
    %v91 = vld [vmem:[#allocation5 + $0x38] sm:$0xf]
    %v92 = vld [vmem:[#allocation5 + $0x3c] sm:$0xf]
    %v93 = vld [vmem:[#allocation5 + $0x40] sm:$0xf]
    %v94 = vld [vmem:[#allocation5 + $0x44] sm:$0xf]
    %v95 = vld [vmem:[#allocation5 + $0x48] sm:$0xf]
    %v96 = vld [vmem:[#allocation5 + $0x4c] sm:$0xf]
    %v97 = vld [vmem:[#allocation5 + $0x50] sm:$0xf]
    %v98 = vld [vmem:[#allocation5 + $0x54] sm:$0xf]
    %v99 = vld [vmem:[#allocation5 + $0x58] sm:$0xf]
    %v100 = vld [vmem:[#allocation5 + $0x5c] sm:$0xf]
    %v101 = vld [vmem:[#allocation5 + $0x60] sm:$0xf]
    %v102 = vld [vmem:[#allocation5 + $0x64] sm:$0xf]
    %v103 = vld [vmem:[#allocation5 + $0x68] sm:$0xf]
    %v104 = vld [vmem:[#allocation5 + $0x6c] sm:$0xf]
    %v105 = vld [vmem:[#allocation5 + $0x70] sm:$0xf]
    %v106 = vld [vmem:[#allocation5 + $0x74] sm:$0xf]
    %v107 = vld [vmem:[#allocation5 + $0x78] sm:$0xf]
    %v108 = vld [vmem:[#allocation5 + $0x7c] sm:$0xf]
    %v109 = vld [vmem:[#allocation5 + $0x80] sm:$0xf]
    %v110 = vld [vmem:[#allocation5 + $0x84] sm:$0xf]
    %v111 = vld [vmem:[#allocation5 + $0x88] sm:$0xf]
    %v112 = vld [vmem:[#allocation5 + $0x8c] sm:$0xf]
    %v113 = vld [vmem:[#allocation5 + $0x90] sm:$0xf]
    %v114 = vld [vmem:[#allocation5 + $0x94] sm:$0xf]
    %v115 = vld [vmem:[#allocation5 + $0x98] sm:$0xf]
    %v116 = vld [vmem:[#allocation5 + $0x9c] sm:$0xf]
    %v117 = vld [vmem:[#allocation5 + $0xa0] sm:$0xf]
    %v118 = vld [vmem:[#allocation5 + $0xa4] sm:$0xf]
    %v119 = vld [vmem:[#allocation5 + $0xa8] sm:$0xf]
    %v120 = vld [vmem:[#allocation5 + $0xac] sm:$0xf]
    %v121 = vld [vmem:[#allocation5 + $0xb0] sm:$0xf]
    %v122 = vld [vmem:[#allocation5 + $0xb4] sm:$0xf]
    %v123 = vld [vmem:[#allocation5 + $0xb8] sm:$0xf]
    %v124 = vld [vmem:[#allocation5 + $0xbc] sm:$0xf]
    %v125 = vld [vmem:[#allocation5 + $0xc0] sm:$0xf]
    %v126 = vld [vmem:[#allocation5 + $0xc4] sm:$0xf]
    %v127 = vld [vmem:[#allocation5 + $0xc8] sm:$0xf]
    %v128 = vld [vmem:[#allocation5 + $0xcc] sm:$0xf]
    %v129 = vld [vmem:[#allocation5 + $0xd0] sm:$0xf]
    %v130 = vld [vmem:[#allocation5 + $0xd4] sm:$0xf]
    %v131 = vld [vmem:[#allocation5 + $0xd8] sm:$0xf]
    %v132 = vld [vmem:[#allocation5 + $0xdc] sm:$0xf]
    %v133 = vld [vmem:[#allocation5 + $0xe0] sm:$0xf]
    %v134 = vld [vmem:[#allocation5 + $0xe4] sm:$0xf]
    %v135 = vld [vmem:[#allocation5 + $0xe8] sm:$0xf]
    %v136 = vld [vmem:[#allocation5 + $0xec] sm:$0xf]
    %v137 = vld [vmem:[#allocation5 + $0xf0] sm:$0xf]
    %v138 = vld [vmem:[#allocation5 + $0xf4] sm:$0xf]
    %v139 = vld [vmem:[#allocation5 + $0xf8] sm:$0xf]
    %v140 = vld [vmem:[#allocation5 + $0xfc] sm:$0xf]
    %v141 = vld [vmem:[#allocation5 + $0x100] sm:$0xf]
    %v142 = vld [vmem:[#allocation5 + $0x104] sm:$0xf]
    %v143 = vld [vmem:[#allocation5 + $0x108] sm:$0xf]
    %v144 = vld [vmem:[#allocation5 + $0x10c] sm:$0xf]
    %v145 = vld [vmem:[#allocation5 + $0x110] sm:$0xf]
    %v146 = vld [vmem:[#allocation5 + $0x114] sm:$0xf]
    %v147 = vld [vmem:[#allocation5 + $0x118] sm:$0xf]
    %v148 = vld [vmem:[#allocation5 + $0x11c] sm:$0xf]
    %v149 = vld [vmem:[#allocation5 + $0x120] sm:$0xf]
    %v150 = vld [vmem:[#allocation5 + $0x124] sm:$0xf]
    %v151 = vld [vmem:[#allocation5 + $0x128] sm:$0xf]
    %v152 = vld [vmem:[#allocation5 + $0x12c] sm:$0xf]
    %v153 = vld [vmem:[#allocation5 + $0x130] sm:$0xf]
    %v154 = vld [vmem:[#allocation5 + $0x134] sm:$0xf]
    %v155 = vld [vmem:[#allocation5 + $0x138] sm:$0xf]
    %v156 = vld [vmem:[#allocation5 + $0x13c] sm:$0xf]
    %v157 = vld [vmem:[#allocation5 + $0x140] sm:$0xf]
    %v158 = vld [vmem:[#allocation5 + $0x144] sm:$0xf]
    %v159 = vld [vmem:[#allocation5 + $0x148] sm:$0xf]
    %v160 = vld [vmem:[#allocation5 + $0x14c] sm:$0xf]
    %v161 = vld [vmem:[#allocation5 + $0x150] sm:$0xf]
    %v162 = vld [vmem:[#allocation5 + $0x154] sm:$0xf]
    %v163 = vld [vmem:[#allocation5 + $0x158] sm:$0xf]
    %v164 = vld [vmem:[#allocation5 + $0x15c] sm:$0xf]
    %v165 = vld [vmem:[#allocation5 + $0x160] sm:$0xf]
    %v166 = vld [vmem:[#allocation5 + $0x164] sm:$0xf]
    %v167 = vld [vmem:[#allocation5 + $0x168] sm:$0xf]
    %v168 = vld [vmem:[#allocation5 + $0x16c] sm:$0xf]
    %v169 = vld [vmem:[#allocation5 + $0x170] sm:$0xf]
    %v170 = vld [vmem:[#allocation5 + $0x174] sm:$0xf]
    %v171 = vld [vmem:[#allocation5 + $0x178] sm:$0xf]
    %v172 = vld [vmem:[#allocation5 + $0x17c] sm:$0xf]
    %v173 = vld [vmem:[#allocation5 + $0x180] sm:$0xf]
    %v174 = vld [vmem:[#allocation5 + $0x184] sm:$0xf]
    %v175 = vld [vmem:[#allocation5 + $0x188] sm:$0xf]
    %v176 = vld [vmem:[#allocation5 + $0x18c] sm:$0xf]
    %v177 = vld [vmem:[#allocation5 + $0x190] sm:$0xf]
    %v178 = vld [vmem:[#allocation5 + $0x194] sm:$0xf]
    %v179 = vld [vmem:[#allocation5 + $0x198] sm:$0xf]
    %v180 = vld [vmem:[#allocation5 + $0x19c] sm:$0xf]
    %v181 = vld [vmem:[#allocation5 + $0x1a0] sm:$0xf]
    %v182 = vld [vmem:[#allocation5 + $0x1a4] sm:$0xf]
    %v183 = vld [vmem:[#allocation5 + $0x1a8] sm:$0xf]
    %v184 = vld [vmem:[#allocation5 + $0x1ac] sm:$0xf]
    %v185 = vld [vmem:[#allocation5 + $0x1b0] sm:$0xf]
    %v186 = vld [vmem:[#allocation5 + $0x1b4] sm:$0xf]
    %v187 = vld [vmem:[#allocation5 + $0x1b8] sm:$0xf]
    %v188 = vld [vmem:[#allocation5 + $0x1bc] sm:$0xf]
    %v189 = vld [vmem:[#allocation5 + $0x1c0] sm:$0xf]
    %v190 = vld [vmem:[#allocation5 + $0x1c4] sm:$0xf]
    %v191 = vld [vmem:[#allocation5 + $0x1c8] sm:$0xf]
    %v192 = vld [vmem:[#allocation5 + $0x1cc] sm:$0xf]
    %v193 = vld [vmem:[#allocation5 + $0x1d0] sm:$0xf]
    %v194 = vld [vmem:[#allocation5 + $0x1d4] sm:$0xf]
    %v195 = vld [vmem:[#allocation5 + $0x1d8] sm:$0xf]
    %v196 = vld [vmem:[#allocation5 + $0x1dc] sm:$0xf]
    %v197 = vld [vmem:[#allocation5 + $0x1e0] sm:$0xf]
    %v198 = vld [vmem:[#allocation5 + $0x1e4] sm:$0xf]
    %v199 = vld [vmem:[#allocation5 + $0x1e8] sm:$0xf]
    %v200 = vld [vmem:[#allocation5 + $0x1ec] sm:$0xf]
    %v201 = vld [vmem:[#allocation5 + $0x1f0] sm:$0xf]
    %v202 = vld [vmem:[#allocation5 + $0x1f4] sm:$0xf]
    %v203 = vld [vmem:[#allocation5 + $0x1f8] sm:$0xf]
    %v204 = vld [vmem:[#allocation5 + $0x1fc] sm:$0xf]
    %v333 = vunpack.c.l.b16 %v77
    %v334 = vunpack.c.l.b16 %v78
    %v335 = vunpack.c.l.b16 %v79
    %v336 = vunpack.c.l.b16 %v80
    %v337 = vunpack.c.l.b16 %v81
    %v338 = vunpack.c.l.b16 %v82
    %v339 = vunpack.c.l.b16 %v83
    %v340 = vunpack.c.l.b16 %v84
    %v341 = vunpack.c.l.b16 %v85
    %v342 = vunpack.c.l.b16 %v86
    %v343 = vunpack.c.l.b16 %v87
    %v344 = vunpack.c.l.b16 %v88
    %v345 = vunpack.c.l.b16 %v89
    %v346 = vunpack.c.l.b16 %v90
    %v347 = vunpack.c.l.b16 %v91
    %v348 = vunpack.c.l.b16 %v92
    %v349 = vunpack.c.l.b16 %v93
    %v350 = vunpack.c.l.b16 %v94
    %v351 = vunpack.c.l.b16 %v95
    %v352 = vunpack.c.l.b16 %v96
    %v353 = vunpack.c.l.b16 %v97
    %v354 = vunpack.c.l.b16 %v98
    %v355 = vunpack.c.l.b16 %v99
    %v356 = vunpack.c.l.b16 %v100
    %v357 = vunpack.c.l.b16 %v101
    %v358 = vunpack.c.l.b16 %v102
    %v359 = vunpack.c.l.b16 %v103
    %v360 = vunpack.c.l.b16 %v104
    %v361 = vunpack.c.l.b16 %v105
    %v362 = vunpack.c.l.b16 %v106
    %v363 = vunpack.c.l.b16 %v107
    %v364 = vunpack.c.l.b16 %v108
    %v365 = vunpack.c.l.b16 %v109
    %v366 = vunpack.c.l.b16 %v110
    %v367 = vunpack.c.l.b16 %v111
    %v368 = vunpack.c.l.b16 %v112
    %v369 = vunpack.c.l.b16 %v113
    %v370 = vunpack.c.l.b16 %v114
    %v371 = vunpack.c.l.b16 %v115
    %v372 = vunpack.c.l.b16 %v116
    %v373 = vunpack.c.l.b16 %v117
    %v374 = vunpack.c.l.b16 %v118
    %v375 = vunpack.c.l.b16 %v119
    %v376 = vunpack.c.l.b16 %v120
    %v377 = vunpack.c.l.b16 %v121
    %v378 = vunpack.c.l.b16 %v122
    %v379 = vunpack.c.l.b16 %v123
    %v380 = vunpack.c.l.b16 %v124
    %v381 = vunpack.c.l.b16 %v125
    %v382 = vunpack.c.l.b16 %v126
    %v383 = vunpack.c.l.b16 %v127
    %v384 = vunpack.c.l.b16 %v128
    %v385 = vunpack.c.l.b16 %v129
    %v386 = vunpack.c.l.b16 %v130
    %v387 = vunpack.c.l.b16 %v131
    %v388 = vunpack.c.l.b16 %v132
    %v389 = vunpack.c.l.b16 %v133
    %v390 = vunpack.c.l.b16 %v134
    %v391 = vunpack.c.l.b16 %v135
    %v392 = vunpack.c.l.b16 %v136
    %v393 = vunpack.c.l.b16 %v137
    %v394 = vunpack.c.l.b16 %v138
    %v395 = vunpack.c.l.b16 %v139
    %v396 = vunpack.c.l.b16 %v140
    %v397 = vunpack.c.l.b16 %v141
    %v398 = vunpack.c.l.b16 %v142
    %v399 = vunpack.c.l.b16 %v143
    %v400 = vunpack.c.l.b16 %v144
    %v401 = vunpack.c.l.b16 %v145
    %v402 = vunpack.c.l.b16 %v146
    %v403 = vunpack.c.l.b16 %v147
    %v404 = vunpack.c.l.b16 %v148
    %v405 = vunpack.c.l.b16 %v149
    %v406 = vunpack.c.l.b16 %v150
    %v407 = vunpack.c.l.b16 %v151
    %v408 = vunpack.c.l.b16 %v152
    %v409 = vunpack.c.l.b16 %v153
    %v410 = vunpack.c.l.b16 %v154
    %v411 = vunpack.c.l.b16 %v155
    %v412 = vunpack.c.l.b16 %v156
    %v413 = vunpack.c.l.b16 %v157
    %v414 = vunpack.c.l.b16 %v158
    %v415 = vunpack.c.l.b16 %v159
    %v416 = vunpack.c.l.b16 %v160
    %v417 = vunpack.c.l.b16 %v161
    %v418 = vunpack.c.l.b16 %v162
    %v419 = vunpack.c.l.b16 %v163
    %v420 = vunpack.c.l.b16 %v164
    %v421 = vunpack.c.l.b16 %v165
    %v422 = vunpack.c.l.b16 %v166
    %v423 = vunpack.c.l.b16 %v167
    %v424 = vunpack.c.l.b16 %v168
    %v425 = vunpack.c.l.b16 %v169
    %v426 = vunpack.c.l.b16 %v170
    %v427 = vunpack.c.l.b16 %v171
    %v428 = vunpack.c.l.b16 %v172
    %v429 = vunpack.c.l.b16 %v173
    %v430 = vunpack.c.l.b16 %v174
    %v431 = vunpack.c.l.b16 %v175
    %v432 = vunpack.c.l.b16 %v176
    %v433 = vunpack.c.l.b16 %v177
    %v434 = vunpack.c.l.b16 %v178
    %v435 = vunpack.c.l.b16 %v179
    %v436 = vunpack.c.l.b16 %v180
    %v437 = vunpack.c.l.b16 %v181
    %v438 = vunpack.c.l.b16 %v182
    %v439 = vunpack.c.l.b16 %v183
    %v440 = vunpack.c.l.b16 %v184
    %v441 = vunpack.c.l.b16 %v185
    %v442 = vunpack.c.l.b16 %v186
    %v443 = vunpack.c.l.b16 %v187
    %v444 = vunpack.c.l.b16 %v188
    %v445 = vunpack.c.l.b16 %v189
    %v446 = vunpack.c.l.b16 %v190
    %v447 = vunpack.c.l.b16 %v191
    %v448 = vunpack.c.l.b16 %v192
    %v449 = vunpack.c.l.b16 %v193
    %v450 = vunpack.c.l.b16 %v194
    %v451 = vunpack.c.l.b16 %v195
    %v452 = vunpack.c.l.b16 %v196
    %v453 = vunpack.c.l.b16 %v197
    %v454 = vunpack.c.l.b16 %v198
    %v455 = vunpack.c.l.b16 %v199
    %v456 = vunpack.c.l.b16 %v200
    %v457 = vunpack.c.l.b16 %v201
    %v458 = vunpack.c.l.b16 %v202
    %v459 = vunpack.c.l.b16 %v203
    %v460 = vunpack.c.l.b16 %v204
    %v461 = vpack.c.b16 %v334, %v333
    %v462 = vpack.c.b16 %v336, %v335
    %v463 = vpack.c.b16 %v338, %v337
    %v464 = vpack.c.b16 %v340, %v339
    %v465 = vpack.c.b16 %v342, %v341
    %v466 = vpack.c.b16 %v344, %v343
    %v467 = vpack.c.b16 %v346, %v345
    %v468 = vpack.c.b16 %v348, %v347
    %v469 = vpack.c.b16 %v350, %v349
    %v470 = vpack.c.b16 %v352, %v351
    %v471 = vpack.c.b16 %v354, %v353
    %v472 = vpack.c.b16 %v356, %v355
    %v473 = vpack.c.b16 %v358, %v357
    %v474 = vpack.c.b16 %v360, %v359
    %v475 = vpack.c.b16 %v362, %v361
    %v476 = vpack.c.b16 %v364, %v363
    %v477 = vpack.c.b16 %v366, %v365
    %v478 = vpack.c.b16 %v368, %v367
    %v479 = vpack.c.b16 %v370, %v369
    %v480 = vpack.c.b16 %v372, %v371
    %v481 = vpack.c.b16 %v374, %v373
    %v482 = vpack.c.b16 %v376, %v375
    %v483 = vpack.c.b16 %v378, %v377
    %v484 = vpack.c.b16 %v380, %v379
    %v485 = vpack.c.b16 %v382, %v381
    %v486 = vpack.c.b16 %v384, %v383
    %v487 = vpack.c.b16 %v386, %v385
    %v488 = vpack.c.b16 %v388, %v387
    %v489 = vpack.c.b16 %v390, %v389
    %v490 = vpack.c.b16 %v392, %v391
    %v491 = vpack.c.b16 %v394, %v393
    %v492 = vpack.c.b16 %v396, %v395
    %v493 = vpack.c.b16 %v398, %v397
    %v494 = vpack.c.b16 %v400, %v399
    %v495 = vpack.c.b16 %v402, %v401
    %v496 = vpack.c.b16 %v404, %v403
    %v497 = vpack.c.b16 %v406, %v405
    %v498 = vpack.c.b16 %v408, %v407
    %v499 = vpack.c.b16 %v410, %v409
    %v500 = vpack.c.b16 %v412, %v411
    %v501 = vpack.c.b16 %v414, %v413
    %v502 = vpack.c.b16 %v416, %v415
    %v503 = vpack.c.b16 %v418, %v417
    %v504 = vpack.c.b16 %v420, %v419
    %v505 = vpack.c.b16 %v422, %v421
    %v506 = vpack.c.b16 %v424, %v423
    %v507 = vpack.c.b16 %v426, %v425
    %v508 = vpack.c.b16 %v428, %v427
    %v509 = vpack.c.b16 %v430, %v429
    %v510 = vpack.c.b16 %v432, %v431
    %v511 = vpack.c.b16 %v434, %v433
    %v512 = vpack.c.b16 %v436, %v435
    %v513 = vpack.c.b16 %v438, %v437
    %v514 = vpack.c.b16 %v440, %v439
    %v515 = vpack.c.b16 %v442, %v441
    %v516 = vpack.c.b16 %v444, %v443
    %v517 = vpack.c.b16 %v446, %v445
    %v518 = vpack.c.b16 %v448, %v447
    %v519 = vpack.c.b16 %v450, %v449
    %v520 = vpack.c.b16 %v452, %v451
    %v521 = vpack.c.b16 %v454, %v453
    %v522 = vpack.c.b16 %v456, %v455
    %v523 = vpack.c.b16 %v458, %v457
    %v524 = vpack.c.b16 %v460, %v459
    %589 = vmatprep.subr.bf16.mxu0 0
    %590 = vmatpush1.bf16.msra.mxu0 %v468
    %591 = vmatprep.subr.bf16.mxu0 0
    %592 = vmatpush1.bf16.msra.mxu0 %v467
    %593 = vmatprep.subr.bf16.mxu0 0
    %594 = vmatpush1.bf16.msra.mxu0 %v466
    %595 = vmatprep.subr.bf16.mxu0 0
    %596 = vmatpush1.bf16.msra.mxu0 %v465
    %597 = vmatprep.subr.bf16.mxu0 0
    %598 = vmatpush1.bf16.msra.mxu0 %v464
    %599 = vmatprep.subr.bf16.mxu0 0
    %600 = vmatpush1.bf16.msra.mxu0 %v463
    %601 = vmatprep.subr.bf16.mxu0 0
    %602 = vmatpush1.bf16.msra.mxu0 %v462
    %603 = vmatprep.subr.bf16.mxu0 0
    %604 = vmatpush1.bf16.msra.mxu0 %v461
    %605 = vmatprep.subr.bf16.mxu0 0
    %606 = vmatpush2.bf16.msra.mxu0 %v476
    %607 = vmatprep.subr.bf16.mxu0 0
    %608 = vmatpush2.bf16.msra.mxu0 %v475
    %609 = vmatprep.subr.bf16.mxu0 0
    %610 = vmatpush2.bf16.msra.mxu0 %v474
    %611 = vmatprep.subr.bf16.mxu0 0
    %612 = vmatpush2.bf16.msra.mxu0 %v473
    %613 = vmatprep.subr.bf16.mxu0 0
    %614 = vmatpush2.bf16.msra.mxu0 %v472
    %615 = vmatprep.subr.bf16.mxu0 0
    %616 = vmatpush2.bf16.msra.mxu0 %v471
    %617 = vmatprep.subr.bf16.mxu0 0
    %618 = vmatpush2.bf16.msra.mxu0 %v470
    %619 = vmatprep.subr.bf16.mxu0 0
    %620 = vmatpush2.bf16.msra.mxu0 %v469
    %621 = vmatprep.mubr.bf16.mxu0 %v70
    %622 = vmatmul.mubr.bf16.gmra.mxu0 %v69
    %v623 = vpop.f32.mrf.mxu0
    %v624 = vadd.f32 0.0, %v623
    %v625 = vpop.f32.mrf.mxu0
    %v626 = vpop.f32.mrf.mxu0
    %v627 = vpop.f32.mrf.mxu0
    %628 = vdwg.mxu0
    %629 = vmatprep.subr.bf16.mxu0 0
    %630 = vmatpush1.bf16.msra.mxu0 %v484
    %631 = vmatprep.subr.bf16.mxu0 0
    %632 = vmatpush1.bf16.msra.mxu0 %v483
    %633 = vmatprep.subr.bf16.mxu0 0
    %634 = vmatpush1.bf16.msra.mxu0 %v482
    %635 = vmatprep.subr.bf16.mxu0 0
    %636 = vmatpush1.bf16.msra.mxu0 %v481
    %637 = vmatprep.subr.bf16.mxu0 0
    %638 = vmatpush1.bf16.msra.mxu0 %v480
    %639 = vmatprep.subr.bf16.mxu0 0
    %640 = vmatpush1.bf16.msra.mxu0 %v479
    %641 = vmatprep.subr.bf16.mxu0 0
    %642 = vmatpush1.bf16.msra.mxu0 %v478
    %643 = vmatprep.subr.bf16.mxu0 0
    %644 = vmatpush1.bf16.msra.mxu0 %v477
    %645 = vmatprep.subr.bf16.mxu0 0
    %646 = vmatpush2.bf16.msra.mxu0 %v492
    %647 = vmatprep.subr.bf16.mxu0 0
    %648 = vmatpush2.bf16.msra.mxu0 %v491
    %649 = vmatprep.subr.bf16.mxu0 0
    %650 = vmatpush2.bf16.msra.mxu0 %v490
    %651 = vmatprep.subr.bf16.mxu0 0
    %652 = vmatpush2.bf16.msra.mxu0 %v489
    %653 = vmatprep.subr.bf16.mxu0 0
    %654 = vmatpush2.bf16.msra.mxu0 %v488
    %655 = vmatprep.subr.bf16.mxu0 0
    %656 = vmatpush2.bf16.msra.mxu0 %v487
    %657 = vmatprep.subr.bf16.mxu0 0
    %658 = vmatpush2.bf16.msra.mxu0 %v486
    %659 = vmatprep.subr.bf16.mxu0 0
    %660 = vmatpush2.bf16.msra.mxu0 %v485
    %661 = vmatprep.mubr.bf16.mxu0 %v72
    %662 = vmatmul.mubr.bf16.gmra.mxu0 %v71
    %v663 = vpop.f32.mrf.mxu0
    %v664 = vadd.f32 %v624, %v663
    %v665 = vpop.f32.mrf.mxu0
    %v666 = vpop.f32.mrf.mxu0
    %v667 = vpop.f32.mrf.mxu0
    %668 = vdwg.mxu0
    %669 = vmatprep.subr.bf16.mxu0 0
    %670 = vmatpush1.bf16.msra.mxu0 %v500
    %671 = vmatprep.subr.bf16.mxu0 0
    %672 = vmatpush1.bf16.msra.mxu0 %v499
    %673 = vmatprep.subr.bf16.mxu0 0
    %674 = vmatpush1.bf16.msra.mxu0 %v498
    %675 = vmatprep.subr.bf16.mxu0 0
    %676 = vmatpush1.bf16.msra.mxu0 %v497
    %677 = vmatprep.subr.bf16.mxu0 0
    %678 = vmatpush1.bf16.msra.mxu0 %v496
    %679 = vmatprep.subr.bf16.mxu0 0
    %680 = vmatpush1.bf16.msra.mxu0 %v495
    %681 = vmatprep.subr.bf16.mxu0 0
    %682 = vmatpush1.bf16.msra.mxu0 %v494
    %683 = vmatprep.subr.bf16.mxu0 0
    %684 = vmatpush1.bf16.msra.mxu0 %v493
    %685 = vmatprep.subr.bf16.mxu0 0
    %686 = vmatpush2.bf16.msra.mxu0 %v508
    %687 = vmatprep.subr.bf16.mxu0 0
    %688 = vmatpush2.bf16.msra.mxu0 %v507
    %689 = vmatprep.subr.bf16.mxu0 0
    %690 = vmatpush2.bf16.msra.mxu0 %v506
    %691 = vmatprep.subr.bf16.mxu0 0
    %692 = vmatpush2.bf16.msra.mxu0 %v505
    %693 = vmatprep.subr.bf16.mxu0 0
    %694 = vmatpush2.bf16.msra.mxu0 %v504
    %695 = vmatprep.subr.bf16.mxu0 0
    %696 = vmatpush2.bf16.msra.mxu0 %v503
    %697 = vmatprep.subr.bf16.mxu0 0
    %698 = vmatpush2.bf16.msra.mxu0 %v502
    %699 = vmatprep.subr.bf16.mxu0 0
    %700 = vmatpush2.bf16.msra.mxu0 %v501
    %701 = vmatprep.mubr.bf16.mxu0 %v74
    %702 = vmatmul.mubr.bf16.gmra.mxu0 %v73
    %v703 = vpop.f32.mrf.mxu0
    %v704 = vadd.f32 %v664, %v703
    %v705 = vpop.f32.mrf.mxu0
    %v706 = vpop.f32.mrf.mxu0
    %v707 = vpop.f32.mrf.mxu0
    %708 = vdwg.mxu0
    %709 = vmatprep.subr.bf16.mxu0 0
    %710 = vmatpush1.bf16.msra.mxu0 %v516
    %711 = vmatprep.subr.bf16.mxu0 0
    %712 = vmatpush1.bf16.msra.mxu0 %v515
    %713 = vmatprep.subr.bf16.mxu0 0
    %714 = vmatpush1.bf16.msra.mxu0 %v514
    %715 = vmatprep.subr.bf16.mxu0 0
    %716 = vmatpush1.bf16.msra.mxu0 %v513
    %717 = vmatprep.subr.bf16.mxu0 0
    %718 = vmatpush1.bf16.msra.mxu0 %v512
    %719 = vmatprep.subr.bf16.mxu0 0
    %720 = vmatpush1.bf16.msra.mxu0 %v511
    %721 = vmatprep.subr.bf16.mxu0 0
    %722 = vmatpush1.bf16.msra.mxu0 %v510
    %723 = vmatprep.subr.bf16.mxu0 0
    %724 = vmatpush1.bf16.msra.mxu0 %v509
    %725 = vmatprep.subr.bf16.mxu0 0
    %726 = vmatpush2.bf16.msra.mxu0 %v524
    %727 = vmatprep.subr.bf16.mxu0 0
    %728 = vmatpush2.bf16.msra.mxu0 %v523
    %729 = vmatprep.subr.bf16.mxu0 0
    %730 = vmatpush2.bf16.msra.mxu0 %v522
    %731 = vmatprep.subr.bf16.mxu0 0
    %732 = vmatpush2.bf16.msra.mxu0 %v521
    %733 = vmatprep.subr.bf16.mxu0 0
    %734 = vmatpush2.bf16.msra.mxu0 %v520
    %735 = vmatprep.subr.bf16.mxu0 0
    %736 = vmatpush2.bf16.msra.mxu0 %v519
    %737 = vmatprep.subr.bf16.mxu0 0
    %738 = vmatpush2.bf16.msra.mxu0 %v518
    %739 = vmatprep.subr.bf16.mxu0 0
    %740 = vmatpush2.bf16.msra.mxu0 %v517
    %741 = vmatprep.mubr.bf16.mxu0 %v76
    %742 = vmatmul.mubr.bf16.gmra.mxu0 %v75
    %v743 = vpop.f32.mrf.mxu0
    %v744 = vadd.f32 %v704, %v743
    %v745 = vpop.f32.mrf.mxu0
    %v746 = vpop.f32.mrf.mxu0
    %v747 = vpop.f32.mrf.mxu0
    %748 = vdwg.mxu0
    %v749 = vld [vmem:[%s2] sm:$0x1]
    %v750 = vld [vmem:[%s3] sm:$0x1]
    %v751 = vld [vmem:[#allocation7] sm:$0xf]
    %v752 = vld [vmem:[#allocation7 + $0x4] sm:$0xf]
    %v753 = vld [vmem:[#allocation7 + $0x8] sm:$0xf]
    %v754 = vld [vmem:[#allocation7 + $0xc] sm:$0xf]
    %v755 = vld [vmem:[#allocation7 + $0x10] sm:$0xf]
    %v756 = vld [vmem:[#allocation7 + $0x14] sm:$0xf]
    %v757 = vld [vmem:[#allocation7 + $0x18] sm:$0xf]
    %v758 = vld [vmem:[#allocation7 + $0x1c] sm:$0xf]
    %v759 = vld [vmem:[#allocation7 + $0x20] sm:$0xf]
    %v760 = vld [vmem:[#allocation7 + $0x24] sm:$0xf]
    %v761 = vld [vmem:[#allocation7 + $0x28] sm:$0xf]
    %v762 = vld [vmem:[#allocation7 + $0x2c] sm:$0xf]
    %v763 = vld [vmem:[#allocation7 + $0x30] sm:$0xf]
    %v764 = vld [vmem:[#allocation7 + $0x34] sm:$0xf]
    %v765 = vld [vmem:[#allocation7 + $0x38] sm:$0xf]
    %v766 = vld [vmem:[#allocation7 + $0x3c] sm:$0xf]
    %v767 = vrot.slane %v744, 4
    %v768 = vadd.f32 %v744, %v767
    %v769 = vrot.slane %v768, 2
    %v770 = vadd.f32 %v768, %v769
    %v771 = vrot.slane %v770, 1
    %v772 = vadd.f32 %v770, %v771
    %v773 = vrcp.pop 8.0
    %v774 = vmul.f32 %v772, %v773
    %v775 = vsub.f32 %v744, %v774
    %v776 = vmul.f32 %v775, %v775
    %v777 = vrot.slane %v776, 4
    %v778 = vadd.f32 %v776, %v777
    %v779 = vrot.slane %v778, 2
    %v780 = vadd.f32 %v778, %v779
    %v781 = vrot.slane %v780, 1
    %v782 = vadd.f32 %v780, %v781
    %v783 = vmul.f32 %v782, %v773
    %v784 = vadd.f32 %v783, 1e-05
    %v785 = vrsqrt.pop %v784
    %v786 = vmul.f32 %v775, %v785
    %v788 = vlaneseq
    %v789 = vshrl.u32 %v788, 7
    %v790 = vsub.s32 0, %v789
    %v791 = vrot.slane %v749, %v790
    %v793 = vmul.f32 %v786, %v791
    %v795 = vlaneseq
    %v796 = vshrl.u32 %v795, 7
    %v797 = vsub.s32 0, %v796
    %v798 = vrot.slane %v750, %v797
    %v800 = vadd.f32 %v793, %v798
    %v801 = vmax.f32 %v800, 0.0
    %v802 = vpack.c.bf16 %v801, %v801
    %v819 = vunpack.c.l.b16 %v751
    %v820 = vunpack.c.l.b16 %v752
    %v821 = vunpack.c.l.b16 %v753
    %v822 = vunpack.c.l.b16 %v754
    %v823 = vunpack.c.l.b16 %v755
    %v824 = vunpack.c.l.b16 %v756
    %v825 = vunpack.c.l.b16 %v757
    %v826 = vunpack.c.l.b16 %v758
    %v827 = vunpack.c.l.b16 %v759
    %v828 = vunpack.c.l.b16 %v760
    %v829 = vunpack.c.l.b16 %v761
    %v830 = vunpack.c.l.b16 %v762
    %v831 = vunpack.c.l.b16 %v763
    %v832 = vunpack.c.l.b16 %v764
    %v833 = vunpack.c.l.b16 %v765
    %v834 = vunpack.c.l.b16 %v766
    %v835 = vpack.c.b16 %v820, %v819
    %v836 = vpack.c.b16 %v822, %v821
    %v837 = vpack.c.b16 %v824, %v823
    %v838 = vpack.c.b16 %v826, %v825
    %v839 = vpack.c.b16 %v828, %v827
    %v840 = vpack.c.b16 %v830, %v829
    %v841 = vpack.c.b16 %v832, %v831
    %v842 = vpack.c.b16 %v834, %v833
    %851 = vmatprep.subr.bf16.mxu0 0
    %852 = vmatpush1.bf16.msra.mxu0 %v842
    %853 = vmatprep.subr.bf16.mxu0 0
    %854 = vmatpush1.bf16.msra.mxu0 %v841
    %855 = vmatprep.subr.bf16.mxu0 0
    %856 = vmatpush1.bf16.msra.mxu0 %v840
    %857 = vmatprep.subr.bf16.mxu0 0
    %858 = vmatpush1.bf16.msra.mxu0 %v839
    %859 = vmatprep.subr.bf16.mxu0 0
    %860 = vmatpush1.bf16.msra.mxu0 %v838
    %861 = vmatprep.subr.bf16.mxu0 0
    %862 = vmatpush1.bf16.msra.mxu0 %v837
    %863 = vmatprep.subr.bf16.mxu0 0
    %864 = vmatpush1.bf16.msra.mxu0 %v836
    %865 = vmatprep.subr.bf16.mxu0 0
    %866 = vmatpush1.bf16.msra.mxu0 %v835
    %867 = vmatprep.subr.bf16.mxu0 0
    %868 = vmatpush2.bf16.msra.mxu0 0
    %869 = vmatprep.subr.bf16.mxu0 0
    %870 = vmatpush2.bf16.msra.mxu0 0
    %871 = vmatprep.subr.bf16.mxu0 0
    %872 = vmatpush2.bf16.msra.mxu0 0
    %873 = vmatprep.subr.bf16.mxu0 0
    %874 = vmatpush2.bf16.msra.mxu0 0
    %875 = vmatprep.subr.bf16.mxu0 0
    %876 = vmatpush2.bf16.msra.mxu0 0
    %877 = vmatprep.subr.bf16.mxu0 0
    %878 = vmatpush2.bf16.msra.mxu0 0
    %879 = vmatprep.subr.bf16.mxu0 0
    %880 = vmatpush2.bf16.msra.mxu0 0
    %881 = vmatprep.subr.bf16.mxu0 0
    %882 = vmatpush2.bf16.msra.mxu0 0
    %883 = vmatprep.mubr.bf16.mxu0 0
    %884 = vmatmul.mubr.bf16.gmra.mxu0 %v802
    %v885 = vpop.f32.mrf.mxu0
    %v886 = vadd.f32 0.0, %v885
    %v887 = vpop.f32.mrf.mxu0
    %v888 = vpop.f32.mrf.mxu0
    %v889 = vpop.f32.mrf.mxu0
    %890 = vdwg.mxu0
    %891 = vst [vmem:[#allocation8] sm:$0xff] %v886
    // Predicated region
    $region34: #{tpu_custom_call.1} parent=1 // pred_check
      _
    $region35: #{tpu_custom_call.1} parent=1 // pred_check_branch
      %893 = sbr.rel (0) target = $region37
    $region36: #{tpu_custom_call.1} parent=1 // pred_region
      %s895 = ssub.s32 128, 128
      %896 = vsyncadd [#allocation4], %s895
      %s898 = sshll.u32 [#allocation8], 4
      %s899 = int_to_ptr.vmem [resolvable:$true] %s898
      %901 = dma.vmem_to_hbm [thread:$0]  %s899, 128, %s5, [#allocation4]
    $region37: #{tpu_custom_call.1} parent=1 // pred_fallthru
      _
    // Predicated region
    $region38: #{tpu_custom_call.1} parent=1 // pred_check
      _
    $region39: #{tpu_custom_call.1} parent=1 // pred_check_branch
      %903 = sbr.rel (0) target = $region41
    $region40: #{tpu_custom_call.1} parent=1 // pred_region
      %904 = dma.done [#allocation4], 128
    $region41: #{tpu_custom_call.1} parent=1 // pred_fallthru
      _
    %905 = vsyncpa [#allocation3], 1
    %906 = vsyncpa [#allocation6], 1
    %907 = vsyncpa [#allocation4], 1

</llo_original>
